<compile_context>
chip_gen: v7x
topology: tpu7x:2x2x1
jax: 0.10.0
libtpu: 0.0.40
codegen_flags: <defaults>
</compile_context>

<pallas_src>
import functools

import jax
import jax.numpy as jnp
from jax.experimental import pallas as pl
from jax.experimental.pallas import tpu as pltpu


def _rup(x, m):
    return ((x + m - 1) // m) * m


def _pad_identity(dtype):
    """Value that never wins a max (valid for float, signed and unsigned ints)."""
    if jnp.issubdtype(dtype, jnp.floating):
        return -jnp.inf
    return int(jnp.iinfo(dtype).min)


def _tpu_vmem_plan():
    """(vmem_limit_bytes, block_budget_bytes) sized per TPU generation."""
    try:
        cap = int(pltpu.get_tpu_info().vmem_capacity_bytes)
    except Exception:
        cap = 64 * 1024 * 1024  # conservative (v7x-sized) if the query fails
    if cap >= 128 * 1024 * 1024:                       # v5e / v6e: 128 MiB physical
        return 100 * 1024 * 1024, 88 * 1024 * 1024
    return 32 * 1024 * 1024, 26 * 1024 * 1024          # v7x: 64 MiB phys / 32 MiB scoped


def _num_tensorcores():
    """Best-effort TensorCore count (2 on v7x megacore, 1 on v5e/v6e)."""
    try:
        info = pltpu.get_tpu_info()
        for name in ("num_cores", "core_count", "num_tensorcores", "tensorcore_count"):
            v = getattr(info, name, None)
            if isinstance(v, int) and v > 0:
                return v
    except Exception:
        pass
    try:
        v = getattr(jax.devices()[0], "num_cores", None)
        if isinstance(v, int) and v > 0:
            return v
    except Exception:
        pass
    return 1


def _pool_geom(H, W, K, S, P):
    Hp, Wp = H + 2 * P, W + 2 * P
    OH = (Hp - K) // S + 1
    OW = (Wp - K) // S + 1
    kh_first = OH * Wp <= Hp * OW   # run the pass with the smaller intermediate first
    return Hp, Wp, OH, OW, kh_first


def _pool_kernel(x_ref, o_ref, *scratch, K, S, P, OH, OW, h_axis, w_axis,
                 pad_val, kh_first):
    """Separable KxK / stride-S max-pool of one block.

    Pools over (h_axis, w_axis) of the block; every other axis is carried
    through.  Max is exact, so all compute stays in the input dtype.
    """
    nd = len(x_ref.shape)

    if P:
        # Materialise the padded slab in VMEM scratch: no extra HBM traffic.
        pad_ref, = scratch
        pad_ref[...] = jnp.full(pad_ref.shape, pad_val, dtype=pad_ref.dtype)
        idx = [slice(None)] * nd
        idx[h_axis] = pl.ds(P, x_ref.shape[h_axis])
        idx[w_axis] = pl.ds(P, x_ref.shape[w_axis])
        pad_ref[tuple(idx)] = x_ref[...]
        src = pad_ref
    else:
        src = x_ref

    def ref_tap(axis, k, size):
        idx = [slice(None)] * nd
        idx[axis] = pl.ds(k, size) if S == 1 else pl.ds(k, size, stride=S)
        return src[tuple(idx)]

    def val_tap(val, axis, k, size):
        idx = [slice(None)] * nd
        idx[axis] = slice(k, k + size) if S == 1 else slice(k, k + S * (size - 1) + 1, S)
        return val[tuple(idx)]

    a1, n1 = (h_axis, OH) if kh_first else (w_axis, OW)
    a2, n2 = (w_axis, OW) if kh_first else (h_axis, OH)

    # Pass 1: K taps along a1 (accumulator initialised from the first tap).
    acc = ref_tap(a1, 0, n1)
    for k in range(1, K):
        acc = jnp.maximum(acc, ref_tap(a1, k, n1))
    # Pass 2: K taps along a2 on the intermediate value.
    out = val_tap(acc, a2, 0, n2)
    for k in range(1, K):
        out = jnp.maximum(out, val_tap(acc, a2, k, n2))
    o_ref[...] = out.astype(o_ref.dtype)


def qmaxpool2d(x, kernel_size=3, stride=1, padding=0):
    """QMaxPooling2d(kernel_size, stride, padding, qi=False).forward(x).

    x: (N, C, H, W), same layout as the PyTorch module.  Returns (N, C, OH, OW).
    The kernel consumes/produces NCHW directly (no relayout passes).
    """
    N, C, H, W = x.shape
    K, S, P = int(kernel_size), int(stride), int(padding)
    Hp, Wp, OH, OW, kh_first = _pool_geom(H, W, K, S, P)
    itemsize = x.dtype.itemsize
    pad_val = _pad_identity(x.dtype)

    vmem_limit, budget = _tpu_vmem_plan()
    sub = max(8, 32 // itemsize)                       # sublane tile: 8/16/32 rows
    phys = lambda r, c: _rup(r, sub) * _rup(c, 128) * itemsize   # physical (sublane,lane) tile

    # Per-channel VMEM cost: double-buffered in/out blocks + pass temps (+ pad slab).
    per_ch = 2 * phys(H, W) + 2 * phys(OH, OW) + phys(OH, OW)
    per_ch += phys(OH, Wp) if kh_first else phys(Hp, OW)
    if P:
        per_ch += phys(Hp, Wp)
    if per_ch > budget:
        # TODO(synk): H-tile with a (K-S)-row halo instead of falling back.
        return _reference_maxpool(x, K, S, P)

    tc = max(1, min(C, budget // per_ch))
    n_ct = pl.cdiv(C, tc)
    # Balance grid steps across TensorCores (v7x megacore).  Single-core chips
    # are never force-split (no artificial ">=2 steps" cap).
    ncores = _num_tensorcores()
    if ncores > 1:
        while (N * n_ct < ncores or (N * n_ct) % ncores != 0) and n_ct < C:
            n_ct += 1
    tc = pl.cdiv(C, n_ct)

    kernel = functools.partial(
        _pool_kernel, K=K, S=S, P=P, OH=OH, OW=OW, h_axis=1, w_axis=2,
        pad_val=pad_val, kh_first=kh_first)
    scratch = [pltpu.VMEM((tc, Hp, Wp), x.dtype)] if P else []

    nbytes = (N * C * H * W + N * C * OH * OW) * itemsize
    cost = pl.CostEstimate(flops=2 * (K - 1) * N * C * OH * OW,
                           transcendentals=0, bytes_accessed=nbytes)

    return pl.pallas_call(
        kernel,
        out_shape=jax.ShapeDtypeStruct((N, C, OH, OW), x.dtype),
        grid=(N, n_ct),
        in_specs=[pl.BlockSpec((None, tc, H, W), lambda n, c: (n, c, 0, 0))],
        out_specs=pl.BlockSpec((None, tc, OH, OW), lambda n, c: (n, c, 0, 0)),
        scratch_shapes=scratch,
        compiler_params=pltpu.CompilerParams(
            dimension_semantics=("parallel", "parallel"),
            vmem_limit_bytes=vmem_limit),
        cost_estimate=cost,
    )(x)


def qmaxpool2d_channels_last(x, kernel_size=3, stride=1, padding=0):
    """Same pooling for channels-last activations: x is (N, H, W, C) -> (N, OH, OW, C).

    Preferred entry point for models that keep activations channels-last:
    C sits dense on the 128 lanes and no relayout is ever needed.
    """
    N, H, W, C = x.shape
    K, S, P = int(kernel_size), int(stride), int(padding)
    Hp, Wp, OH, OW, kh_first = _pool_geom(H, W, K, S, P)
    itemsize = x.dtype.itemsize
    pad_val = _pad_identity(x.dtype)

    vmem_limit, budget = _tpu_vmem_plan()
    sub = max(8, 32 // itemsize)
    phys = lambda maj, r, tc: maj * _rup(r, sub) * _rup(tc, 128) * itemsize

    def block_bytes(tc):
        b = 2 * phys(H, W, tc) + 2 * phys(OH, OW, tc) + phys(OH, OW, tc)
        b += phys(OH, Wp, tc) if kh_first else phys(Hp, OW, tc)
        if P:
            b += phys(Hp, Wp, tc)
        return b

    # The lane (C) tile must be either the full C or a multiple of 128.
    if block_bytes(min(C, 128)) > budget:
        # TODO(synk): H-tile with a (K-S)-row halo instead of falling back.
        ref = _reference_maxpool(jnp.transpose(x, (0, 3, 1, 2)), K, S, P)
        return jnp.transpose(ref, (0, 2, 3, 1))
    if C <= 128 or block_bytes(C) <= budget:
        tc = C
    else:
        tc = 128
        while tc + 128 < C and block_bytes(tc + 128) <= budget:
            tc += 128
    n_ct = pl.cdiv(C, tc)
    # NOTE: cross-core step balancing is applied on the NCHW path; here the lane
    # tile must stay a 128-multiple (or full C), so we keep the largest legal tile.

    kernel = functools.partial(
        _pool_kernel, K=K, S=S, P=P, OH=OH, OW=OW, h_axis=0, w_axis=1,
        pad_val=pad_val, kh_first=kh_first)
    scratch = [pltpu.VMEM((Hp, Wp, tc), x.dtype)] if P else []

    nbytes = (N * C * H * W + N * C * OH * OW) * itemsize
    cost = pl.CostEstimate(flops=2 * (K - 1) * N * C * OH * OW,
                           transcendentals=0, bytes_accessed=nbytes)

    return pl.pallas_call(
        kernel,
        out_shape=jax.ShapeDtypeStruct((N, OH, OW, C), x.dtype),
        grid=(N, n_ct),
        in_specs=[pl.BlockSpec((None, H, W, tc), lambda n, c: (n, 0, 0, c))],
        out_specs=pl.BlockSpec((None, OH, OW, tc), lambda n, c: (n, 0, 0, c)),
        scratch_shapes=scratch,
        compiler_params=pltpu.CompilerParams(
            dimension_semantics=("parallel", "parallel"),
            vmem_limit_bytes=vmem_limit),
        cost_estimate=cost,
    )(x)


def _reference_maxpool(x, kernel_size=3, stride=1, padding=0):
    """Pure-JAX reference via lax.reduce_window (NCHW)."""
    init = jnp.array(_pad_identity(x.dtype), dtype=x.dtype)
    return jax.lax.reduce_window(
        x, init, jax.lax.max,
        window_dimensions=(1, 1, kernel_size, kernel_size),
        window_strides=(1, 1, stride, stride),
        padding=((0, 0), (0, 0), (padding, padding), (padding, padding)))


if __name__ == "__main__":
    key = jax.random.PRNGKey(0)
    # Small NCHW input consistent with the module: batch=2, channels=4, 16x16.
    x = jax.random.normal(key, (2, 4, 16, 16), dtype=jnp.float32)

    # Module defaults: kernel_size=3, stride=1, padding=0.
    out = jax.block_until_ready(qmaxpool2d(x, 3, 1, 0))
    ref = _reference_maxpool(x, 3, 1, 0)
    assert out.shape == ref.shape, (out.shape, ref.shape)
    assert jnp.array_equal(out, ref), "Pallas max-pool mismatch (default config)"

    # Padded config: exercises the in-kernel VMEM pad slab (no extra HBM pass).
    out_p = jax.block_until_ready(qmaxpool2d(x, 3, 1, 1))
    ref_p = _reference_maxpool(x, 3, 1, 1)
    assert out_p.shape == ref_p.shape, (out_p.shape, ref_p.shape)
    assert jnp.array_equal(out_p, ref_p), "Pallas max-pool mismatch (padding=1)"

    # bf16 stays in its native dtype inside the kernel (max is exact).
    xb = x.astype(jnp.bfloat16)
    out_b = jax.block_until_ready(qmaxpool2d(xb, 3, 1, 0))
    assert out_b.dtype == jnp.bfloat16
    assert jnp.array_equal(out_b, _reference_maxpool(xb, 3, 1, 0)), "bf16 mismatch"

    # Channels-last entry point (NHWC), also with padding.
    xl = jnp.transpose(x, (0, 2, 3, 1))
    out_l = jax.block_until_ready(qmaxpool2d_channels_last(xl, 3, 1, 1))
    assert jnp.array_equal(out_l, jnp.transpose(ref_p, (0, 2, 3, 1))), "NHWC mismatch"

    # Lane-dense width case for the NCHW path (W = 128).
    xw = jax.random.normal(jax.random.PRNGKey(0), (1, 8, 16, 128), dtype=jnp.float32)
    out_w = jax.block_until_ready(qmaxpool2d(xw, 3, 1, 0))
    assert jnp.array_equal(out_w, _reference_maxpool(xw, 3, 1, 0)), "wide-W mismatch"

    print("KERNEL_OK")
</pallas_src>

<mosaic_0001>
module attributes {stable_mosaic.version = 11 : i64} {
  func.func @_pool_kernel(%arg0: i32, %arg1: i32, %arg2: memref<1x4x16x16xf32, #tpu.memory_space<vmem>>, %arg3: memref<1x4x14x14xf32, #tpu.memory_space<vmem>>) attributes {dimension_semantics = [#tpu.dimension_semantics<parallel>, #tpu.dimension_semantics<parallel>], iteration_bounds = array<i64: 2, 1>, scalar_prefetch = 0 : i64, scratch_operands = 0 : i64, tpu.core_type = #tpu.core_type<tc>, window_params = [{transform_indices = @transform_0, window_bounds = array<i64: 1, 4, 16, 16>}, {transform_indices = @transform_1, window_bounds = array<i64: 1, 4, 14, 14>}]} {
    %c0 = arith.constant 0 : index
    %c0_0 = arith.constant 0 : index
    %c0_1 = arith.constant 0 : index
    %c0_2 = arith.constant 0 : index
    %0 = vector.load %arg2[%c0, %c0_0, %c0_1, %c0_2] : memref<1x4x16x16xf32, #tpu.memory_space<vmem>>, vector<1x4x14x16xf32>
    %1 = vector.shape_cast %0 : vector<1x4x14x16xf32> to vector<4x14x16xf32>
    %c0_3 = arith.constant 0 : index
    %c0_4 = arith.constant 0 : index
    %c1 = arith.constant 1 : index
    %c0_5 = arith.constant 0 : index
    %2 = vector.load %arg2[%c0_3, %c0_4, %c1, %c0_5] : memref<1x4x16x16xf32, #tpu.memory_space<vmem>>, vector<1x4x14x16xf32>
    %3 = vector.shape_cast %2 : vector<1x4x14x16xf32> to vector<4x14x16xf32>
    %4 = arith.maximumf %1, %3 : vector<4x14x16xf32>
    %c0_6 = arith.constant 0 : index
    %c0_7 = arith.constant 0 : index
    %c2 = arith.constant 2 : index
    %c0_8 = arith.constant 0 : index
    %5 = vector.load %arg2[%c0_6, %c0_7, %c2, %c0_8] : memref<1x4x16x16xf32, #tpu.memory_space<vmem>>, vector<1x4x14x16xf32>
    %6 = vector.shape_cast %5 : vector<1x4x14x16xf32> to vector<4x14x16xf32>
    %7 = arith.maximumf %4, %6 : vector<4x14x16xf32>
    %8 = vector.extract_strided_slice %7 {offsets = [0, 0, 0], sizes = [4, 14, 14], strides = [1, 1, 1]} : vector<4x14x16xf32> to vector<4x14x14xf32>
    %9 = vector.extract_strided_slice %7 {offsets = [0, 0, 1], sizes = [4, 14, 14], strides = [1, 1, 1]} : vector<4x14x16xf32> to vector<4x14x14xf32>
    %10 = arith.maximumf %8, %9 : vector<4x14x14xf32>
    %11 = vector.extract_strided_slice %7 {offsets = [0, 0, 2], sizes = [4, 14, 14], strides = [1, 1, 1]} : vector<4x14x16xf32> to vector<4x14x14xf32>
    %12 = arith.maximumf %10, %11 : vector<4x14x14xf32>
    %c0_9 = arith.constant 0 : index
    %c0_10 = arith.constant 0 : index
    %c0_11 = arith.constant 0 : index
    %c0_12 = arith.constant 0 : index
    %13 = vector.load %arg3[%c0_9, %c0_10, %c0_11, %c0_12] : memref<1x4x14x14xf32, #tpu.memory_space<vmem>>, vector<1x4x14x14xf32>
    %14 = vector.shape_cast %13 : vector<1x4x14x14xf32> to vector<4x14x14xf32>
    %15 = vector.shape_cast %12 : vector<4x14x14xf32> to vector<1x4x14x14xf32>
    tpu.vector_store %arg3[%c0_9, %c0_10, %c0_11, %c0_12], %15 {strides = array<i32>} : memref<1x4x14x14xf32, #tpu.memory_space<vmem>>, vector<1x4x14x14xf32>,
    return
  }
  func.func @transform_0(%arg0: i32, %arg1: i32) -> (i32, i32, i32, i32) {
    %c0_i32 = arith.constant 0 : i32
    %c0_i32_0 = arith.constant 0 : i32
    %c0_i32_1 = arith.constant 0 : i32
    return %arg0, %arg1, %c0_i32, %c0_i32_0 : i32, i32, i32, i32
  }
  func.func @transform_1(%arg0: i32, %arg1: i32) -> (i32, i32, i32, i32) {
    %c0_i32 = arith.constant 0 : i32
    %c0_i32_0 = arith.constant 0 : i32
    %c0_i32_1 = arith.constant 0 : i32
    return %arg0, %arg1, %c0_i32, %c0_i32_0 : i32, i32, i32, i32
  }
}

</mosaic_0001>

<llo_original>
// kernel: tpu_custom_call.1
$region0: #{tpu_custom_call.1}
  #allocation0 [shape = 'u32[]', space=smem, size = 0x4, offset = 0x4, fixed_abs, tag = 'smem constant byte address 0x4 - core index']
  #allocation1 [shape = 'u32[144,128]{1,0:T(1,128)}', space=vmem, size = 0x12000, scoped, tag = 'internal scratch']
  %s0 = inlined_call_operand.hbm [shape: f32[2,4,16,16], index: 0, kind: input, shape index: {}]
  %s1 = inlined_call_operand.vmem [shape: f32[2,4,14,14], index: 1, kind: output, shape index: {}]
  %s2 = sld [smem:[#allocation0]]
  $region41: #{tpu_custom_call.1} parent=0
    _
  %s4 = ssub.s32 1, %s2
  %s5 = scalar_select 0, %s4, %s2
  $region1: #{tpu_custom_call.1} parent=0
    #allocation2 [shape = 'u8[65536]{0}', space=vmem, size = 0x10000, scoped, tag = 'input window, operand 0']
    #allocation3 [shape = 's32[2]{0}', space=sflag, size = 0x8, scoped, tag = 'scoped memory for tpu_custom_call.1']
    %6 = vsyncpa [#allocation3], 0
    %s7 = scalar_lea.sflag [#allocation3], 1
    %8 = vsyncpa %s7, 0
    loop: start=0, step=1, limit=4
    $region2: #{tpu_custom_call.1} parent=1 // loop_pre_header
      _
    $region3: #{tpu_custom_call.1} parent=1 // loop_header
      %s10 = sphi 0, %s14
      %p11 = scmp.ge.s32.totalorder %s10, 4
      %s17 = sphi 0, %s29
      %s18 = sphi 0, %s25
      %s19 = sphi 0, %s17
      %s20 = sphi 0, %s18
      %s21 = sphi 0, %s19
      %s22 = sphi 0, %s20
      %s34 = sphi 0, %s36
      %s37 = sphi 0, %s34
      %s38 = sphi 0, %s37
      %s54 = sphi 0, %s38
      %s62 = sphi 0, %s64
      %s65 = sphi 0, %s62
      %s66 = sphi 0, %s65
      %s82 = sphi 0, %s66
    $region4: #{tpu_custom_call.1} parent=1 // loop_header_branch
      %13 = sbr.rel (%p11) target = $region8
    $region5: #{tpu_custom_call.1} parent=1 // loop_body
      %s15 = ssub.s32 %s10, 1
      %s16 = ssub.s32 %s10, 2
      %s23 = sadd.s32 1, %s18
      %p24 = scmp.ge.s32.totalorder %s23, 1
      %s25 = scalar_select %p24, 0, %s23
      %s26 = sadd.s32 1, %s17
      %s27 = scalar_select %p24, %s26, %s17
      %p28 = scmp.ge.s32.totalorder %s27, 2
      %s29 = scalar_select %p28, 0, %s27
      %s30 = ssub.s32 %s17, %s29
      %s31 = ssub.s32 %s18, %s25
      %s32 = sor.u32 %s30, %s31
      %p33 = scmp.eq.s32.totalorder %s32, 0
      %s35 = sadd.s32 %s34, 1
      %s36 = scalar_select %p33, %s34, %s35
      %p39 = pneg %p33
      %p40 = scmp.eq.s32.totalorder %s10, 1
      %p41 = por %p39, %p40
      %p42 = scmp.ne.s32.totalorder %s34, %s37
      %p43 = scmp.eq.s32.totalorder %s10, 0
      %p44 = por %p42, %p43
      %p45 = scmp.ne.s32.totalorder %s34, %s37
      %p46 = scmp.eq.s32.totalorder %s15, 1
      %p47 = por %p45, %p46
      %p48 = scmp.ne.s32.totalorder %s37, %s38
      %p49 = scmp.eq.s32.totalorder %s15, 0
      %p50 = por %p48, %p49
      %p51 = scmp.ne.s32.totalorder %s37, %s38
      %p52 = scmp.eq.s32.totalorder %s16, 1
      %p53 = por %p51, %p52
      %p55 = scmp.ne.s32.totalorder %s38, %s54
      %p56 = scmp.eq.s32.totalorder %s16, 0
      %p57 = por %p55, %p56
      %s58 = ssub.s32 %s17, %s29
      %s59 = ssub.s32 %s18, %s25
      %s60 = sor.u32 %s58, %s59
      %p61 = scmp.eq.s32.totalorder %s60, 0
      %s63 = sadd.s32 %s62, 1
      %s64 = scalar_select %p61, %s62, %s63
      %p67 = pneg %p61
      %p68 = scmp.eq.s32.totalorder %s10, 1
      %p69 = por %p67, %p68
      %p70 = scmp.ne.s32.totalorder %s62, %s65
      %p71 = scmp.eq.s32.totalorder %s10, 0
      %p72 = por %p70, %p71
      %p73 = scmp.ne.s32.totalorder %s62, %s65
      %p74 = scmp.eq.s32.totalorder %s15, 1
      %p75 = por %p73, %p74
      %p76 = scmp.ne.s32.totalorder %s65, %s66
      %p77 = scmp.eq.s32.totalorder %s15, 0
      %p78 = por %p76, %p77
      %p79 = scmp.ne.s32.totalorder %s65, %s66
      %p80 = scmp.eq.s32.totalorder %s16, 1
      %p81 = por %p79, %p80
      %p83 = scmp.ne.s32.totalorder %s66, %s82
      %p84 = scmp.eq.s32.totalorder %s16, 0
      %p85 = por %p83, %p84
      %p86 = scmp.le.s32.totalorder 1, %s10
      %p87 = scmp.lt.s32.totalorder %s10, 3
      %p88 = pnand %p86, %p87
      %p89 = pneg %p88
      // Predicated region
      $region9: #{tpu_custom_call.1} parent=5 // pred_check
        _
      $region10: #{tpu_custom_call.1} parent=5 // pred_check_branch
        %91 = sbr.rel (%p88) target = $region12
      $region11: #{tpu_custom_call.1} parent=5 // pred_region
        %s92 = ssub.s32 %s10, 1
      $region12: #{tpu_custom_call.1} parent=5 // pred_fallthru
        _
      %p93 = scmp.lt.s32.totalorder %s10, 2
      // Predicated region
      $region13: #{tpu_custom_call.1} parent=5 // pred_check
        %p94 = pneg %p93
      $region14: #{tpu_custom_call.1} parent=5 // pred_check_branch
        %96 = sbr.rel (%p94) target = $region16
      $region15: #{tpu_custom_call.1} parent=5 // pred_region
        // Predicated region
        $region17: #{tpu_custom_call.1} parent=15 // pred_check
          %p97 = pneg %p44
        $region18: #{tpu_custom_call.1} parent=15 // pred_check_branch
          %99 = sbr.rel (%p97) target = $region20
        $region19: #{tpu_custom_call.1} parent=15 // pred_region
          %s100 = sand.u32 %s34, 1
          %s101 = scalar_lea.sflag [#allocation3], %s100
          %s102 = sand.u32 %s34, 1
          %s103 = smul.addr %s102, 64
          %s104 = scalar_lea.vmem [#allocation2], %s103
          %s105 = smul.u32 4, %s18
          %s107 = ssub.s32 1024, 1024
          %108 = vsyncadd %s101, %s107
          %s109 = smul.addr %s105, 2
          %s110 = smul.addr %s17, 8
          %s111 = sadd.s32 %s109, %s110
          %s112 = smul.addr %s111, 128
          %s113 = scalar_lea.hbm %s0, %s112
          %s114 = sshll.u32 %s104, 4
          %s115 = int_to_ptr.vmem [resolvable:$true] %s114
          %120 = dma.hbm_to_vmem [thread:$0]  %s113, 1024, %s115, %s101, 128, 128, 8
        $region20: #{tpu_custom_call.1} parent=15 // pred_fallthru
          _
      $region16: #{tpu_custom_call.1} parent=5 // pred_fallthru
        _
      %p121 = scmp.le.s32.totalorder 1, %s10
      %p122 = scmp.lt.s32.totalorder %s10, 3
      %p123 = pnand %p121, %p122
      %p124 = pneg %p123
      // Predicated region
      $region21: #{tpu_custom_call.1} parent=5 // pred_check
        _
      $region22: #{tpu_custom_call.1} parent=5 // pred_check_branch
        %126 = sbr.rel (%p123) target = $region24
      $region23: #{tpu_custom_call.1} parent=5 // pred_region
        %s127 = ssub.s32 %s10, 1
        %s128 = sand.u32 %s37, 1
        %s129 = scalar_lea.sflag [#allocation3], %s128
        %s130 = sand.u32 %s37, 1
        %s131 = smul.addr %s130, 64
        %s132 = scalar_lea.vmem [#allocation2], %s131
        // Predicated region
        $region25: #{tpu_custom_call.1} parent=23 // pred_check
          %p133 = pneg %p50
        $region26: #{tpu_custom_call.1} parent=23 // pred_check_branch
          %135 = sbr.rel (%p133) target = $region28
        $region27: #{tpu_custom_call.1} parent=23 // pred_region
          %136 = dma.done %s129, 1024
        $region28: #{tpu_custom_call.1} parent=23 // pred_fallthru
          _
        %s137 = sand.u32 %s37, 1
        %s138 = scalar_lea.sflag [#allocation3], %s137
        %s139 = sand.u32 %s37, 1
        %s140 = smul.addr %s139, 64
        %s141 = scalar_lea.vmem [#allocation2], %s140
        %p142 = pneg %p50
        %p143 = pneg %p47
        %p144 = pneg %p78
        %p145 = pneg %p75
        %s146 = smul.u32 4, %s20
        %p147 = scmp.lt.s32.totalorder %s19, 1
        %s148 = scalar_select %p147, %s19, 1
        %p149 = scmp.lt.s32.totalorder %s146, 3
        %s150 = scalar_select %p149, %s146, 3
        %s151 = smul.addr %s150, 2
        %s152 = smul.addr %s148, 8
        %s153 = sadd.s32 %s151, %s152
        %s154 = smul.addr %s153, 8
        %s155 = scalar_lea.vmem %s1, %s154
        %s156 = smul.u32 4, %s20
        %s157 = smul.u32 4, %s20
        %p158 = scmp.lt.s32.totalorder %s19, 1
        %s159 = scalar_select %p158, %s19, 1
        %p160 = scmp.lt.s32.totalorder %s157, 3
        %s161 = scalar_select %p160, %s157, 3
        %s162 = smul.addr %s161, 2
        %s163 = smul.addr %s159, 8
        %s164 = sadd.s32 %s162, %s163
        %s165 = smul.addr %s164, 8
        %s166 = scalar_lea.vmem %s1, %s165
        %s167 = smul.u32 4, %s20
        %v168 = vld [vmem:[%s132] sm:$0xff]
        %v169 = vld [vmem:[%s132 + $0x8] sm:$0x3f]
        %v170 = vld [vmem:[%s132 + $0x10] sm:$0xff]
        %v171 = vld [vmem:[%s132 + $0x18] sm:$0x3f]
        %v172 = vld [vmem:[%s132 + $0x20] sm:$0xff]
        %v173 = vld [vmem:[%s132 + $0x28] sm:$0x3f]
        %v174 = vld [vmem:[%s132 + $0x30] sm:$0xff]
        %v175 = vld [vmem:[%s132 + $0x38] sm:$0x3f]
        %v176 = vld [vmem:[%s132 + $0x1] sm:$0xff]
        %v177 = vld [vmem:[%s132 + $0x9] sm:$0x3f]
        %v178 = vld [vmem:[%s132 + $0x11] sm:$0xff]
        %v179 = vld [vmem:[%s132 + $0x19] sm:$0x3f]
        %v180 = vld [vmem:[%s132 + $0x21] sm:$0xff]
        %v181 = vld [vmem:[%s132 + $0x29] sm:$0x3f]
        %v182 = vld [vmem:[%s132 + $0x31] sm:$0xff]
        %v183 = vld [vmem:[%s132 + $0x39] sm:$0x3f]
        %v184 = vmax.f32 %v168, %v176
        %v185 = vmax.f32 %v169, %v177
        %v186 = vmax.f32 %v170, %v178
        %v187 = vmax.f32 %v171, %v179
        %v188 = vmax.f32 %v172, %v180
        %v189 = vmax.f32 %v173, %v181
        %v190 = vmax.f32 %v174, %v182
        %v191 = vmax.f32 %v175, %v183
        %v192 = vld [vmem:[%s132 + $0x2] sm:$0xff]
        %v193 = vld [vmem:[%s132 + $0xa] sm:$0x3f]
        %v194 = vld [vmem:[%s132 + $0x12] sm:$0xff]
        %v195 = vld [vmem:[%s132 + $0x1a] sm:$0x3f]
        %v196 = vld [vmem:[%s132 + $0x22] sm:$0xff]
        %v197 = vld [vmem:[%s132 + $0x2a] sm:$0x3f]
        %v198 = vld [vmem:[%s132 + $0x32] sm:$0xff]
        %v199 = vld [vmem:[%s132 + $0x3a] sm:$0x3f]
        %v200 = vmax.f32 %v184, %v192
        %v201 = vmax.f32 %v185, %v193
        %v202 = vmax.f32 %v186, %v194
        %v203 = vmax.f32 %v187, %v195
        %v204 = vmax.f32 %v188, %v196
        %v205 = vmax.f32 %v189, %v197
        %v206 = vmax.f32 %v190, %v198
        %v207 = vmax.f32 %v191, %v199
        %216 = vrot.lane.b32.xlu0 %v200, 127
        %v217 = vpop.permute.xlu0 %216
        %218 = vrot.lane.b32.xlu0 %v201, 127
        %v219 = vpop.permute.xlu0 %218
        %220 = vrot.lane.b32.xlu0 %v202, 127
        %v221 = vpop.permute.xlu0 %220
        %222 = vrot.lane.b32.xlu0 %v203, 127
        %v223 = vpop.permute.xlu0 %222
        %224 = vrot.lane.b32.xlu0 %v204, 127
        %v225 = vpop.permute.xlu0 %224
        %226 = vrot.lane.b32.xlu0 %v205, 127
        %v227 = vpop.permute.xlu0 %226
        %228 = vrot.lane.b32.xlu0 %v206, 127
        %v229 = vpop.permute.xlu0 %228
        %230 = vrot.lane.b32.xlu0 %v207, 127
        %v231 = vpop.permute.xlu0 %230
        %v240 = vmax.f32 %v200, %v217
        %v241 = vmax.f32 %v201, %v219
        %v242 = vmax.f32 %v202, %v221
        %v243 = vmax.f32 %v203, %v223
        %v244 = vmax.f32 %v204, %v225
        %v245 = vmax.f32 %v205, %v227
        %v246 = vmax.f32 %v206, %v229
        %v247 = vmax.f32 %v207, %v231
        %248 = vrot.lane.b32.xlu0 %v200, 126
        %v249 = vpop.permute.xlu0 %248
        %250 = vrot.lane.b32.xlu0 %v201, 126
        %v251 = vpop.permute.xlu0 %250
        %252 = vrot.lane.b32.xlu0 %v202, 126
        %v253 = vpop.permute.xlu0 %252
        %254 = vrot.lane.b32.xlu0 %v203, 126
        %v255 = vpop.permute.xlu0 %254
        %256 = vrot.lane.b32.xlu0 %v204, 126
        %v257 = vpop.permute.xlu0 %256
        %258 = vrot.lane.b32.xlu0 %v205, 126
        %v259 = vpop.permute.xlu0 %258
        %260 = vrot.lane.b32.xlu0 %v206, 126
        %v261 = vpop.permute.xlu0 %260
        %262 = vrot.lane.b32.xlu0 %v207, 126
        %v263 = vpop.permute.xlu0 %262
        %v272 = vmax.f32 %v240, %v249
        %v273 = vmax.f32 %v241, %v251
        %v274 = vmax.f32 %v242, %v253
        %v275 = vmax.f32 %v243, %v255
        %v276 = vmax.f32 %v244, %v257
        %v277 = vmax.f32 %v245, %v259
        %v278 = vmax.f32 %v246, %v261
        %v279 = vmax.f32 %v247, %v263
        %vm280 = vcmask 113664
        %281 = vst.msk [vmem:[%s166] sm:$0xff] %vm280, %v272
        %vm282 = vcmask 111616
        %283 = vst.msk [vmem:[%s166 + $0x8] sm:$0x3f] %vm282, %v273
        %284 = vst.msk [vmem:[%s166 + $0x10] sm:$0xff] %vm280, %v274
        %285 = vst.msk [vmem:[%s166 + $0x18] sm:$0x3f] %vm282, %v275
        %286 = vst.msk [vmem:[%s166 + $0x20] sm:$0xff] %vm280, %v276
        %287 = vst.msk [vmem:[%s166 + $0x28] sm:$0x3f] %vm282, %v277
        %288 = vst.msk [vmem:[%s166 + $0x30] sm:$0xff] %vm280, %v278
        %289 = vst.msk [vmem:[%s166 + $0x38] sm:$0x3f] %vm282, %v279
        %s290 = smul.u32 4, %s20
        %p291 = scmp.lt.s32.totalorder %s19, 1
        %s292 = scalar_select %p291, %s19, 1
        %p293 = scmp.lt.s32.totalorder %s290, 3
        %s294 = scalar_select %p293, %s290, 3
        %s295 = smul.addr %s294, 2
        %s296 = smul.addr %s292, 8
        %s297 = sadd.s32 %s295, %s296
        %s298 = smul.addr %s297, 8
        %s299 = scalar_lea.vmem %s1, %s298
        // Predicated region
        $region29: #{tpu_custom_call.1} parent=23 // pred_check
          %p300 = pneg %p75
        $region30: #{tpu_custom_call.1} parent=23 // pred_check_branch
          %302 = sbr.rel (%p300) target = $region32
        $region31: #{tpu_custom_call.1} parent=23 // pred_region
          %s303 = smul.u32 4, %s20
        $region32: #{tpu_custom_call.1} parent=23 // pred_fallthru
          _
      $region24: #{tpu_custom_call.1} parent=5 // pred_fallthru
        _
      %p304 = scmp.le.s32.totalorder 2, %s10
      // Predicated region
      $region33: #{tpu_custom_call.1} parent=5 // pred_check
        %p305 = pneg %p304
      $region34: #{tpu_custom_call.1} parent=5 // pred_check_branch
        %307 = sbr.rel (%p305) target = $region36
      $region35: #{tpu_custom_call.1} parent=5 // pred_region
        %s308 = ssub.s32 %s10, 2
        // Predicated region
        $region37: #{tpu_custom_call.1} parent=35 // pred_check
          %p309 = pneg %p81
        $region38: #{tpu_custom_call.1} parent=35 // pred_check_branch
          %311 = sbr.rel (%p309) target = $region40
        $region39: #{tpu_custom_call.1} parent=35 // pred_region
          %s312 = smul.u32 4, %s22
          %p313 = scmp.lt.s32.totalorder %s21, 1
          %s314 = scalar_select %p313, %s21, 1
          %p315 = scmp.lt.s32.totalorder %s312, 3
          %s316 = scalar_select %p315, %s312, 3
          %s317 = smul.addr %s316, 2
          %s318 = smul.addr %s314, 8
          %s319 = sadd.s32 %s317, %s318
          %s320 = smul.addr %s319, 8
          %s321 = scalar_lea.vmem %s1, %s320
        $region40: #{tpu_custom_call.1} parent=35 // pred_fallthru
          _
      $region36: #{tpu_custom_call.1} parent=5 // pred_fallthru
        _
    $region6: #{tpu_custom_call.1} parent=1 // loop_footer
      %s14 = sadd.s32 1, %s10
    $region7: #{tpu_custom_call.1} parent=1 // loop_footer_branch
      %9 = sbr.rel target = $region3
    $region8: #{tpu_custom_call.1} parent=1 // loop_exit
      _
    %322 = vsyncpa [#allocation3], 1
    %s323 = scalar_lea.sflag [#allocation3], 1
    %324 = vsyncpa %s323, 1

</llo_original>
